<compile_context>
chip_gen: v7x
topology: tpu7x:2x2x1
jax: 0.10.0
libtpu: 0.0.40
codegen_flags: <defaults>
</compile_context>

<pallas_src>
import math
import functools

import jax
import jax.numpy as jnp
from jax import lax
from jax.experimental import pallas as pl
from jax.experimental.pallas import tpu as pltpu


def _round_up(x, m):
    return (x + m - 1) // m * m


def make_positional_encoding(max_len, d_model):
    position = jnp.arange(max_len, dtype=jnp.float32)[:, None]
    div_term = jnp.exp(
        jnp.arange(0, d_model, 2, dtype=jnp.float32) * (-math.log(10000.0) / d_model)
    )
    pe = jnp.zeros((max_len, d_model), jnp.float32)
    pe = pe.at[:, 0::2].set(jnp.sin(position * div_term))
    pe = pe.at[:, 1::2].set(jnp.cos(position * div_term))
    return pe  # (max_len, d_model)


def _encoder_kernel(ids_ref, emb_ref, pe_ref, out_ref, *,
                    scale, batch, tseq, ntoken, use_onehot):
    # ids_ref : VMEM (R, 1) int32      flat row r = local_s * batch + b
    # emb_ref : VMEM (ntoken, ninp_pad)  whole table, resident, single copy
    # pe_ref  : VMEM (tseq, ninp_pad)    pipelined PE slice for this seq tile
    # out_ref : VMEM (R, ninp_pad)       lane-dense output slab
    R = tseq * batch
    ids = ids_ref[...]                      # (R, 1) int32
    emb = emb_ref[...]                      # (ntoken, ninp_pad) f32

    if use_onehot:
        # Exact vectorized row selection on the (otherwise idle) MXU.
        vocab_iota = lax.broadcasted_iota(jnp.int32, (R, ntoken), 1)
        tok_oh = (ids == vocab_iota).astype(emb.dtype)          # (R, ntoken)
        emb_rows = jnp.dot(tok_oh, emb,
                           preferred_element_type=jnp.float32,
                           precision=lax.Precision.HIGHEST)     # (R, ninp_pad)
    else:
        # Large-vocabulary path: vectorized gather from the VMEM-resident table.
        emb_rows = jnp.take(emb, ids[:, 0], axis=0).astype(jnp.float32)

    # Broadcast the PE slice over batch: pe_rows[r] = pe[r // batch], built as
    # a tiny position one-hot matmul (no sublane reshapes, exact selection).
    row_iota = lax.broadcasted_iota(jnp.int32, (R, tseq), 0)
    seq_iota = lax.broadcasted_iota(jnp.int32, (R, tseq), 1)
    lo = seq_iota * batch
    pos_oh = ((row_iota >= lo) & (row_iota < lo + batch)).astype(jnp.float32)
    pe_rows = jnp.dot(pos_oh, pe_ref[...],
                      preferred_element_type=jnp.float32,
                      precision=lax.Precision.HIGHEST)          # (R, ninp_pad)

    out_ref[...] = (emb_rows * scale + pe_rows).astype(out_ref.dtype)


def encoder_forward(src, emb_table, pe_table, *,
                    target_rows_per_tile=1024,
                    onehot_max_vocab=2048,
                    out_dtype=jnp.float32):
    """src: (batch, seq) int token ids; emb_table: (ntoken, ninp);
    pe_table: (max_len, ninp). Returns (seq, batch, ninp) in out_dtype."""
    batch, seq = src.shape
    ntoken, ninp = emb_table.shape
    max_len = pe_table.shape[0]
    if seq > max_len:
        raise ValueError(f"seq={seq} exceeds positional-encoding max_len={max_len}")
    scale = math.sqrt(ninp)

    # Lane-dense feature dim (multiple of 128); sliced off at the end.
    ninp_pad = _round_up(ninp, 128)
    # Seq-tile size: aim for ~target_rows_per_tile output rows per grid step.
    tseq = max(8, _round_up(min(seq, max(1, target_rows_per_tile // batch)), 8))
    seq_pad = _round_up(seq, tseq)
    n_tiles = seq_pad // tseq
    R = tseq * batch

    def pad_cols(x):
        return jnp.pad(x, ((0, 0), (0, ninp_pad - ninp))) if ninp_pad != ninp else x

    emb_p = pad_cols(emb_table.astype(jnp.float32))                  # (ntoken, ninp_pad)
    pe_p = pad_cols(pe_table[:seq].astype(jnp.float32))              # (seq, ninp_pad)
    if seq_pad != seq:
        pe_p = jnp.pad(pe_p, ((0, seq_pad - seq), (0, 0)))

    # Token ids in seq-major flat order (row = s * batch + b), as a (N, 1) block.
    ids = src.T.astype(jnp.int32).reshape(-1)
    if seq_pad != seq:
        ids = jnp.pad(ids, (0, (seq_pad - seq) * batch))
    ids = ids.reshape(seq_pad * batch, 1)

    # VMEM budget: resident table + double-buffered pipelined operands + headroom,
    # clamped below the physical per-core VMEM capacity.
    f32b = 4
    table_bytes = ntoken * ninp_pad * f32b
    pe_blk = tseq * ninp_pad * f32b
    ids_blk = R * 128 * 4                      # (R, 1) int32 pads to 128 lanes
    out_blk = R * ninp_pad * jnp.dtype(out_dtype).itemsize
    need = int((table_bytes + 2 * (pe_blk + ids_blk + out_blk) + (2 << 20)) * 1.2)
    try:
        cap = int(pltpu.get_tpu_info().vmem_capacity_bytes)
    except Exception:
        cap = 64 * 1024 * 1024
    vmem_limit = min(int(cap * 0.9), max(need, 32 * 1024 * 1024))

    use_onehot = ntoken <= onehot_max_vocab

    kernel = functools.partial(
        _encoder_kernel, scale=scale, batch=batch, tseq=tseq,
        ntoken=ntoken, use_onehot=use_onehot)

    out_flat = pl.pallas_call(
        kernel,
        out_shape=jax.ShapeDtypeStruct((seq_pad * batch, ninp_pad), out_dtype),
        grid=(n_tiles,),
        in_specs=[
            # Per-tile token-id block (VMEM, pipelined).
            pl.BlockSpec((R, 1), lambda t: (t, 0)),
            # Whole embedding table resident in VMEM, single copy (not pipelined).
            pl.BlockSpec(memory_space=pltpu.MemorySpace.VMEM),
            # Positional-encoding slice for this seq tile (VMEM, pipelined).
            pl.BlockSpec((tseq, ninp_pad), lambda t: (t, 0)),
        ],
        out_specs=pl.BlockSpec((R, ninp_pad), lambda t: (t, 0)),
        compiler_params=pltpu.CompilerParams(
            dimension_semantics=("parallel",),
            vmem_limit_bytes=vmem_limit,
        ),
    )(ids, emb_p, pe_p)

    return out_flat[: seq * batch, :ninp].reshape(seq, batch, ninp)


if __name__ == "__main__":
    # Small, deterministic shapes consistent with the module.
    batch, seq = 2, 8
    ntoken, ninp, max_len = 32, 32, 64

    key = jax.random.PRNGKey(0)
    k_src, k_emb = jax.random.split(key)

    src = jax.random.randint(k_src, (batch, seq), 0, ntoken, dtype=jnp.int32)
    # nn.Embedding weight init: uniform(-0.1, 0.1), deterministic here.
    emb_table = jax.random.uniform(
        k_emb, (ntoken, ninp), jnp.float32, minval=-0.1, maxval=0.1
    )
    pe_table = make_positional_encoding(max_len, ninp)

    out = encoder_forward(src, emb_table, pe_table)
    out = jax.block_until_ready(out)

    # Pure-JAX reference for the same forward semantics (eval mode).
    ref = jnp.take(emb_table, src.T, axis=0) * math.sqrt(ninp) + pe_table[:seq, None, :]
    assert out.shape == (seq, batch, ninp)
    assert jnp.allclose(out, ref, atol=1e-5), "mismatch vs reference"

    print("KERNEL_OK")
</pallas_src>

<mosaic_0001>
module attributes {stable_mosaic.version = 11 : i64} {
  func.func @_encoder_kernel(%arg0: i32, %arg1: memref<16x1xi32, #tpu.memory_space<vmem>>, %arg2: memref<32x128xf32, #tpu.memory_space<vmem>>, %arg3: memref<8x128xf32, #tpu.memory_space<vmem>>, %arg4: memref<16x128xf32, #tpu.memory_space<vmem>>) attributes {dimension_semantics = [#tpu.dimension_semantics<parallel>], iteration_bounds = array<i64: 1>, scalar_prefetch = 0 : i64, scratch_operands = 0 : i64, tpu.core_type = #tpu.core_type<tc>, window_params = [{transform_indices = @transform_0, window_bounds = array<i64: 16, 1>}, {pipeline_mode = #tpu.pipeline_mode<synchronous>, transform_indices = @transform_1, window_bounds = array<i64: 32, 128>}, {transform_indices = @transform_2, window_bounds = array<i64: 8, 128>}, {transform_indices = @transform_3, window_bounds = array<i64: 16, 128>}]} {
    %c0 = arith.constant 0 : index
    %c0_0 = arith.constant 0 : index
    %0 = vector.load %arg1[%c0, %c0_0] : memref<16x1xi32, #tpu.memory_space<vmem>>, vector<16x1xi32>
    %c0_1 = arith.constant 0 : index
    %c0_2 = arith.constant 0 : index
    %1 = vector.load %arg2[%c0_1, %c0_2] : memref<32x128xf32, #tpu.memory_space<vmem>>, vector<32x128xf32>
    %2 = tpu.iota {dimensions = array<i32: 1>} : vector<16x32xi32>
    %3 = vector.broadcast %0 : vector<16x1xi32> to vector<16x32xi32>
    %4 = arith.cmpi eq, %3, %2 : vector<16x32xi32>
    %5 = arith.extui %4 : vector<16x32xi1> to vector<16x32xi32>
    %6 = arith.sitofp %5 : vector<16x32xi32> to vector<16x32xf32>
    %cst = arith.constant dense<0.000000e+00> : vector<16x128xf32>
    %7 = tpu.matmul %6, %1, %cst {dimension_numbers = #tpu.dot_dimension_numbers<[1], [0], [0], [1], [0, 0, 1, 1], [], []>, precision = #tpu.contract_precision<fp32>} : vector<16x32xf32>, vector<32x128xf32>, vector<16x128xf32> -> vector<16x128xf32>
    %8 = tpu.iota {dimensions = array<i32: 0>} : vector<16x8xi32>
    %9 = tpu.iota {dimensions = array<i32: 1>} : vector<16x8xi32>
    %c2_i32 = arith.constant 2 : i32
    %10 = vector.broadcast %c2_i32 : i32 to vector<16x8xi32>
    %11 = arith.muli %9, %10 : vector<16x8xi32>
    %12 = arith.cmpi sge, %8, %11 : vector<16x8xi32>
    %c2_i32_3 = arith.constant 2 : i32
    %13 = vector.broadcast %c2_i32_3 : i32 to vector<16x8xi32>
    %14 = arith.addi %11, %13 : vector<16x8xi32>
    %15 = arith.cmpi slt, %8, %14 : vector<16x8xi32>
    %16 = arith.andi %12, %15 : vector<16x8xi1>
    %17 = arith.extui %16 : vector<16x8xi1> to vector<16x8xi32>
    %18 = arith.sitofp %17 : vector<16x8xi32> to vector<16x8xf32>
    %c0_4 = arith.constant 0 : index
    %c0_5 = arith.constant 0 : index
    %19 = vector.load %arg3[%c0_4, %c0_5] : memref<8x128xf32, #tpu.memory_space<vmem>>, vector<8x128xf32>
    %cst_6 = arith.constant dense<0.000000e+00> : vector<16x128xf32>
    %20 = tpu.matmul %18, %19, %cst_6 {dimension_numbers = #tpu.dot_dimension_numbers<[1], [0], [0], [1], [0, 0, 1, 1], [], []>, precision = #tpu.contract_precision<fp32>} : vector<16x8xf32>, vector<8x128xf32>, vector<16x128xf32> -> vector<16x128xf32>
    %cst_7 = arith.constant 5.65685415 : f32
    %21 = vector.broadcast %cst_7 : f32 to vector<16x128xf32>
    %22 = arith.mulf %7, %21 : vector<16x128xf32>
    %23 = arith.addf %22, %20 : vector<16x128xf32>
    %c0_8 = arith.constant 0 : index
    %c0_9 = arith.constant 0 : index
    %24 = vector.load %arg4[%c0_8, %c0_9] : memref<16x128xf32, #tpu.memory_space<vmem>>, vector<16x128xf32>
    tpu.vector_store %arg4[%c0_8, %c0_9], %23 {strides = array<i32>} : memref<16x128xf32, #tpu.memory_space<vmem>>, vector<16x128xf32>,
    return
  }
  func.func @transform_0(%arg0: i32) -> (i32, i32) {
    %c0_i32 = arith.constant 0 : i32
    %c0_i32_0 = arith.constant 0 : i32
    return %arg0, %c0_i32 : i32, i32
  }
  func.func @transform_1(%arg0: i32) -> (i32, i32) {
    %c0_i32 = arith.constant 0 : i32
    %c0_i32_0 = arith.constant 0 : i32
    %c0_i32_1 = arith.constant 0 : i32
    return %c0_i32, %c0_i32_0 : i32, i32
  }
  func.func @transform_2(%arg0: i32) -> (i32, i32) {
    %c0_i32 = arith.constant 0 : i32
    %c0_i32_0 = arith.constant 0 : i32
    return %arg0, %c0_i32 : i32, i32
  }
  func.func @transform_3(%arg0: i32) -> (i32, i32) {
    %c0_i32 = arith.constant 0 : i32
    %c0_i32_0 = arith.constant 0 : i32
    return %arg0, %c0_i32 : i32, i32
  }
}

</mosaic_0001>

<llo_original>
// kernel: tpu_custom_call.1
$region0: #{tpu_custom_call.1}
  #allocation0 [shape = 'u32[]', space=smem, size = 0x4, offset = 0x4, fixed_abs, tag = 'smem constant byte address 0x4 - core index']
  #allocation1 [shape = 'u32[144,128]{1,0:T(1,128)}', space=vmem, size = 0x12000, scoped, tag = 'internal scratch']
  %s0 = inlined_call_operand.vmem [shape: s32[16,1], index: 0, kind: input, shape index: {}]
  %s1 = inlined_call_operand.hbm [shape: f32[32,128], index: 1, kind: input, shape index: {}]
  %s2 = inlined_call_operand.vmem [shape: f32[8,128], index: 2, kind: input, shape index: {}]
  %s3 = inlined_call_operand.hbm [shape: f32[16,128], index: 3, kind: output, shape index: {}]
  %s4 = sld [smem:[#allocation0]]
  $region26: #{tpu_custom_call.1} parent=0
    _
  %s6 = ssub.s32 1, %s4
  %s7 = scalar_select 0, %s6, %s4
  $region1: #{tpu_custom_call.1} parent=0
    #allocation2 [shape = 'u8[16384]{0}', space=vmem, size = 0x4000, scoped, tag = 'input window, operand 1, single buffered']
    #allocation3 [shape = 's32[1]{0}', space=sflag, size = 0x4, scoped, tag = 'scoped memory for tpu_custom_call.1']
    #allocation4 [shape = 's32[1]{0}', space=sflag, size = 0x4, scoped, tag = 'scoped memory for tpu_custom_call.1']
    #allocation5 [shape = 'u8[8192]{0}', space=vmem, size = 0x2000, scoped, tag = 'output window, operand 0, single buffered']
    %8 = vsyncpa [#allocation3], 0
    %9 = vsyncpa [#allocation4], 0
    // Predicated region
    $region2: #{tpu_custom_call.1} parent=1 // pred_check
      _
    $region3: #{tpu_custom_call.1} parent=1 // pred_check_branch
      %11 = sbr.rel (0) target = $region5
    $region4: #{tpu_custom_call.1} parent=1 // pred_region
      _
    $region5: #{tpu_custom_call.1} parent=1 // pred_fallthru
      _
    // Predicated region
    $region6: #{tpu_custom_call.1} parent=1 // pred_check
      _
    $region7: #{tpu_custom_call.1} parent=1 // pred_check_branch
      %13 = sbr.rel (0) target = $region9
    $region8: #{tpu_custom_call.1} parent=1 // pred_region
      %s15 = ssub.s32 512, 512
      %16 = vsyncadd [#allocation3], %s15
      %s17 = sshll.u32 [#allocation2], 4
      %s18 = int_to_ptr.vmem [resolvable:$true] %s17
      %23 = dma.hbm_to_vmem [thread:$0]  %s1, 512, %s18, [#allocation3], 128, 128, 8
    $region9: #{tpu_custom_call.1} parent=1 // pred_fallthru
      _
    // Predicated region
    $region10: #{tpu_custom_call.1} parent=1 // pred_check
      _
    $region11: #{tpu_custom_call.1} parent=1 // pred_check_branch
      %25 = sbr.rel (0) target = $region13
    $region12: #{tpu_custom_call.1} parent=1 // pred_region
      _
    $region13: #{tpu_custom_call.1} parent=1 // pred_fallthru
      _
    // Predicated region
    $region14: #{tpu_custom_call.1} parent=1 // pred_check
      _
    $region15: #{tpu_custom_call.1} parent=1 // pred_check_branch
      %27 = sbr.rel (0) target = $region17
    $region16: #{tpu_custom_call.1} parent=1 // pred_region
      %28 = dma.done [#allocation3], 512
    $region17: #{tpu_custom_call.1} parent=1 // pred_fallthru
      _
    %v29 = vld [vmem:[%s0] sm:$0xff]
    %v30 = vld [vmem:[%s0 + $0x8] sm:$0xff]
    %v31 = vld [vmem:[#allocation2] sm:$0xff]
    %v32 = vld [vmem:[#allocation2 + $0x8] sm:$0xff]
    %v33 = vld [vmem:[#allocation2 + $0x10] sm:$0xff]
    %v34 = vld [vmem:[#allocation2 + $0x18] sm:$0xff]
    %v35 = vlaneseq
    %v36 = vand.u32 %v35, 127
    %37 = vset.pattern.permute.xlu0 0
    %38 = vperm.xlu0 %37, %v29
    %v39 = vpop.permute.xlu0 %38
    %40 = vset.pattern.permute.xlu0 0
    %41 = vperm.xlu0 %40, %v30
    %v42 = vpop.permute.xlu0 %41
    %vm43 = vcmp.eq.s32.totalorder %v39, %v36
    %vm44 = vcmp.eq.s32.totalorder %v42, %v36
    %v45 = vsel %vm43, 1, 0
    %v46 = vsel %vm44, 1, 0
    %v47 = vcvt.s32.f32 %v45
    %v48 = vcvt.s32.f32 %v46
    %vm49 = vcmask 261120
    %v51 = vsel %vm49, %v47, 0
    %v54 = vsel %vm49, %v48, 0
    %56 = vmatprep.subr.mxu0 0.0
    %v57 = vand.u32 %v31, 4294901760
    %58 = vmatpush1.msra.mxu0 %v57
    %59 = vmatprep.subr.mxu0 0.0
    %v60 = vand.u32 %v32, 4294901760
    %61 = vmatpush1.msra.mxu0 %v60
    %62 = vmatprep.subr.mxu0 0.0
    %v63 = vand.u32 %v33, 4294901760
    %64 = vmatpush1.msra.mxu0 %v63
    %65 = vmatprep.subr.mxu0 0.0
    %v66 = vand.u32 %v34, 4294901760
    %67 = vmatpush1.msra.mxu0 %v66
    %68 = vmatprep.subr.mxu0 0.0
    %69 = vmatpush1.msra.mxu0 0.0
    %70 = vmatprep.subr.mxu0 0.0
    %71 = vmatpush1.msra.mxu0 0.0
    %72 = vmatprep.subr.mxu0 0.0
    %73 = vmatpush1.msra.mxu0 0.0
    %74 = vmatprep.subr.mxu0 0.0
    %75 = vmatpush1.msra.mxu0 0.0
    %76 = vmatprep.subr.mxu0 0.0
    %77 = vmatpush1.msra.mxu0 0.0
    %78 = vmatprep.subr.mxu0 0.0
    %79 = vmatpush1.msra.mxu0 0.0
    %80 = vmatprep.subr.mxu0 0.0
    %81 = vmatpush1.msra.mxu0 0.0
    %82 = vmatprep.subr.mxu0 0.0
    %83 = vmatpush1.msra.mxu0 0.0
    %84 = vmatprep.subr.mxu0 0.0
    %85 = vmatpush1.msra.mxu0 0.0
    %86 = vmatprep.subr.mxu0 0.0
    %87 = vmatpush1.msra.mxu0 0.0
    %88 = vmatprep.subr.mxu0 0.0
    %89 = vmatpush1.msra.mxu0 0.0
    %90 = vmatprep.subr.mxu0 0.0
    %91 = vmatpush1.msra.mxu0 0.0
    %92 = vmatprep.subr.mxu0 0.0
    %93 = vmatpush1.msra.mxu0 0.0
    %94 = vmatprep.subr.mxu0 0.0
    %95 = vmatpush1.msra.mxu0 0.0
    %96 = vmatprep.subr.mxu0 0.0
    %97 = vmatpush1.msra.mxu0 0.0
    %98 = vmatprep.subr.mxu0 0.0
    %99 = vmatpush1.msra.mxu0 0.0
    %100 = vmatprep.subr.mxu0 0.0
    %101 = vmatpush1.msra.mxu0 0.0
    %102 = vmatprep.subr.mxu0 0.0
    %103 = vmatpush1.msra.mxu0 0.0
    %104 = vmatprep.subr.mxu0 0.0
    %105 = vmatpush1.msra.mxu0 0.0
    %106 = vmatprep.subr.mxu0 0.0
    %107 = vmatpush1.msra.mxu0 0.0
    %108 = vmatprep.subr.mxu0 0.0
    %109 = vmatpush1.msra.mxu0 0.0
    %110 = vmatprep.subr.mxu0 0.0
    %111 = vmatpush1.msra.mxu0 0.0
    %112 = vmatprep.subr.mxu0 0.0
    %113 = vmatpush1.msra.mxu0 0.0
    %114 = vmatprep.subr.mxu0 0.0
    %115 = vmatpush1.msra.mxu0 0.0
    %116 = vmatprep.subr.mxu0 0.0
    %117 = vmatpush1.msra.mxu0 0.0
    %118 = vmatprep.subr.mxu0 0.0
    %119 = vmatpush1.msra.mxu0 0.0
    %120 = vmatprep.subr.mxu0 0.0
    %121 = vmatpush1.msra.mxu0 0.0
    %122 = vmatprep.subr.mxu0 0.0
    %123 = vmatpush1.msra.mxu0 0.0
    %124 = vmatprep.mubr.f32.mxu0 0.0
    %v125 = vand.u32 %v51, 4294901760
    %v126 = vsub.f32 %v51, %v125
    %v127 = vand.u32 %v126, 4294901760
    %v128 = vsub.f32 %v126, %v127
    %v129 = vand.u32 %v128, 4294901760
    %130 = vmatmul.mubr.f32.gmra.mrb[0].mxu0 %v129
    %v131 = vpop.f32.mrb[0].mxu0
    %v132 = vadd.f32 0.0, %v131
    %v133 = vpop.f32.mrb[0].mxu0
    %134 = vmatprep.mubr.f32.mxu0 0.0
    %v135 = vand.u32 %v54, 4294901760
    %v136 = vsub.f32 %v54, %v135
    %v137 = vand.u32 %v136, 4294901760
    %v138 = vsub.f32 %v136, %v137
    %v139 = vand.u32 %v138, 4294901760
    %140 = vmatmul.mubr.f32.gmra.mrb[0].mxu0 %v139
    %v141 = vpop.f32.mrb[0].mxu0
    %v142 = vadd.f32 0.0, %v141
    %v143 = vpop.f32.mrb[0].mxu0
    %144 = vdwg.mxu0
    %145 = vmatprep.subr.mxu0 0.0
    %v146 = vand.u32 %v31, 4294901760
    %v147 = vsub.f32 %v31, %v146
    %v148 = vand.u32 %v147, 4294901760
    %v149 = vsub.f32 %v147, %v148
    %v150 = vand.u32 %v149, 4294901760
    %151 = vmatpush1.msra.mxu0 %v150
    %152 = vmatprep.subr.mxu0 0.0
    %v153 = vand.u32 %v32, 4294901760
    %v154 = vsub.f32 %v32, %v153
    %v155 = vand.u32 %v154, 4294901760
    %v156 = vsub.f32 %v154, %v155
    %v157 = vand.u32 %v156, 4294901760
    %158 = vmatpush1.msra.mxu0 %v157
    %159 = vmatprep.subr.mxu0 0.0
    %v160 = vand.u32 %v33, 4294901760
    %v161 = vsub.f32 %v33, %v160
    %v162 = vand.u32 %v161, 4294901760
    %v163 = vsub.f32 %v161, %v162
    %v164 = vand.u32 %v163, 4294901760
    %165 = vmatpush1.msra.mxu0 %v164
    %166 = vmatprep.subr.mxu0 0.0
    %v167 = vand.u32 %v34, 4294901760
    %v168 = vsub.f32 %v34, %v167
    %v169 = vand.u32 %v168, 4294901760
    %v170 = vsub.f32 %v168, %v169
    %v171 = vand.u32 %v170, 4294901760
    %172 = vmatpush1.msra.mxu0 %v171
    %173 = vmatprep.subr.mxu0 0.0
    %174 = vmatpush1.msra.mxu0 0.0
    %175 = vmatprep.subr.mxu0 0.0
    %176 = vmatpush1.msra.mxu0 0.0
    %177 = vmatprep.subr.mxu0 0.0
    %178 = vmatpush1.msra.mxu0 0.0
    %179 = vmatprep.subr.mxu0 0.0
    %180 = vmatpush1.msra.mxu0 0.0
    %181 = vmatprep.subr.mxu0 0.0
    %182 = vmatpush1.msra.mxu0 0.0
    %183 = vmatprep.subr.mxu0 0.0
    %184 = vmatpush1.msra.mxu0 0.0
    %185 = vmatprep.subr.mxu0 0.0
    %186 = vmatpush1.msra.mxu0 0.0
    %187 = vmatprep.subr.mxu0 0.0
    %188 = vmatpush1.msra.mxu0 0.0
    %189 = vmatprep.subr.mxu0 0.0
    %190 = vmatpush1.msra.mxu0 0.0
    %191 = vmatprep.subr.mxu0 0.0
    %192 = vmatpush1.msra.mxu0 0.0
    %193 = vmatprep.subr.mxu0 0.0
    %194 = vmatpush1.msra.mxu0 0.0
    %195 = vmatprep.subr.mxu0 0.0
    %196 = vmatpush1.msra.mxu0 0.0
    %197 = vmatprep.subr.mxu0 0.0
    %198 = vmatpush1.msra.mxu0 0.0
    %199 = vmatprep.subr.mxu0 0.0
    %200 = vmatpush1.msra.mxu0 0.0
    %201 = vmatprep.subr.mxu0 0.0
    %202 = vmatpush1.msra.mxu0 0.0
    %203 = vmatprep.subr.mxu0 0.0
    %204 = vmatpush1.msra.mxu0 0.0
    %205 = vmatprep.subr.mxu0 0.0
    %206 = vmatpush1.msra.mxu0 0.0
    %207 = vmatprep.subr.mxu0 0.0
    %208 = vmatpush1.msra.mxu0 0.0
    %209 = vmatprep.subr.mxu0 0.0
    %210 = vmatpush1.msra.mxu0 0.0
    %211 = vmatprep.subr.mxu0 0.0
    %212 = vmatpush1.msra.mxu0 0.0
    %213 = vmatprep.subr.mxu0 0.0
    %214 = vmatpush1.msra.mxu0 0.0
    %215 = vmatprep.subr.mxu0 0.0
    %216 = vmatpush1.msra.mxu0 0.0
    %217 = vmatprep.subr.mxu0 0.0
    %218 = vmatpush1.msra.mxu0 0.0
    %219 = vmatprep.subr.mxu0 0.0
    %220 = vmatpush1.msra.mxu0 0.0
    %221 = vmatprep.subr.mxu0 0.0
    %222 = vmatpush1.msra.mxu0 0.0
    %223 = vmatprep.subr.mxu0 0.0
    %224 = vmatpush1.msra.mxu0 0.0
    %225 = vmatprep.subr.mxu0 0.0
    %226 = vmatpush1.msra.mxu0 0.0
    %227 = vmatprep.subr.mxu0 0.0
    %228 = vmatpush1.msra.mxu0 0.0
    %229 = vmatprep.mubr.f32.mxu0 0.0
    %v230 = vand.u32 %v51, 4294901760
    %231 = vmatmul.mubr.f32.gmra.mrb[0].mxu0 %v230
    %v232 = vpop.f32.mrb[0].mxu0
    %v233 = vadd.f32 %v132, %v232
    %v234 = vpop.f32.mrb[0].mxu0
    %235 = vmatprep.mubr.f32.mxu0 0.0
    %v236 = vand.u32 %v54, 4294901760
    %237 = vmatmul.mubr.f32.gmra.mrb[0].mxu0 %v236
    %v238 = vpop.f32.mrb[0].mxu0
    %v239 = vadd.f32 %v142, %v238
    %v240 = vpop.f32.mrb[0].mxu0
    %241 = vdwg.mxu0
    %242 = vmatprep.subr.mxu0 0.0
    %v243 = vand.u32 %v31, 4294901760
    %v244 = vsub.f32 %v31, %v243
    %245 = vmatpush1.msra.mxu0 %v244
    %246 = vmatprep.subr.mxu0 0.0
    %v247 = vand.u32 %v32, 4294901760
    %v248 = vsub.f32 %v32, %v247
    %249 = vmatpush1.msra.mxu0 %v248
    %250 = vmatprep.subr.mxu0 0.0
    %v251 = vand.u32 %v33, 4294901760
    %v252 = vsub.f32 %v33, %v251
    %253 = vmatpush1.msra.mxu0 %v252
    %254 = vmatprep.subr.mxu0 0.0
    %v255 = vand.u32 %v34, 4294901760
    %v256 = vsub.f32 %v34, %v255
    %257 = vmatpush1.msra.mxu0 %v256
    %258 = vmatprep.subr.mxu0 0.0
    %259 = vmatpush1.msra.mxu0 0.0
    %260 = vmatprep.subr.mxu0 0.0
    %261 = vmatpush1.msra.mxu0 0.0
    %262 = vmatprep.subr.mxu0 0.0
    %263 = vmatpush1.msra.mxu0 0.0
    %264 = vmatprep.subr.mxu0 0.0
    %265 = vmatpush1.msra.mxu0 0.0
    %266 = vmatprep.subr.mxu0 0.0
    %267 = vmatpush1.msra.mxu0 0.0
    %268 = vmatprep.subr.mxu0 0.0
    %269 = vmatpush1.msra.mxu0 0.0
    %270 = vmatprep.subr.mxu0 0.0
    %271 = vmatpush1.msra.mxu0 0.0
    %272 = vmatprep.subr.mxu0 0.0
    %273 = vmatpush1.msra.mxu0 0.0
    %274 = vmatprep.subr.mxu0 0.0
    %275 = vmatpush1.msra.mxu0 0.0
    %276 = vmatprep.subr.mxu0 0.0
    %277 = vmatpush1.msra.mxu0 0.0
    %278 = vmatprep.subr.mxu0 0.0
    %279 = vmatpush1.msra.mxu0 0.0
    %280 = vmatprep.subr.mxu0 0.0
    %281 = vmatpush1.msra.mxu0 0.0
    %282 = vmatprep.subr.mxu0 0.0
    %283 = vmatpush1.msra.mxu0 0.0
    %284 = vmatprep.subr.mxu0 0.0
    %285 = vmatpush1.msra.mxu0 0.0
    %286 = vmatprep.subr.mxu0 0.0
    %287 = vmatpush1.msra.mxu0 0.0
    %288 = vmatprep.subr.mxu0 0.0
    %289 = vmatpush1.msra.mxu0 0.0
    %290 = vmatprep.subr.mxu0 0.0
    %291 = vmatpush1.msra.mxu0 0.0
    %292 = vmatprep.subr.mxu0 0.0
    %293 = vmatpush1.msra.mxu0 0.0
    %294 = vmatprep.subr.mxu0 0.0
    %295 = vmatpush1.msra.mxu0 0.0
    %296 = vmatprep.subr.mxu0 0.0
    %297 = vmatpush1.msra.mxu0 0.0
    %298 = vmatprep.subr.mxu0 0.0
    %299 = vmatpush1.msra.mxu0 0.0
    %300 = vmatprep.subr.mxu0 0.0
    %301 = vmatpush1.msra.mxu0 0.0
    %302 = vmatprep.subr.mxu0 0.0
    %303 = vmatpush1.msra.mxu0 0.0
    %304 = vmatprep.subr.mxu0 0.0
    %305 = vmatpush1.msra.mxu0 0.0
    %306 = vmatprep.subr.mxu0 0.0
    %307 = vmatpush1.msra.mxu0 0.0
    %308 = vmatprep.subr.mxu0 0.0
    %309 = vmatpush1.msra.mxu0 0.0
    %310 = vmatprep.subr.mxu0 0.0
    %311 = vmatpush1.msra.mxu0 0.0
    %312 = vmatprep.subr.mxu0 0.0
    %313 = vmatpush1.msra.mxu0 0.0
    %314 = vmatprep.mubr.f32.mxu0 0.0
    %v315 = vand.u32 %v51, 4294901760
    %v316 = vsub.f32 %v51, %v315
    %317 = vmatmul.mubr.f32.gmra.mrb[0].mxu0 %v316
    %v318 = vpop.f32.mrb[0].mxu0
    %v319 = vadd.f32 %v233, %v318
    %v320 = vpop.f32.mrb[0].mxu0
    %321 = vmatprep.mubr.f32.mxu0 0.0
    %v322 = vand.u32 %v54, 4294901760
    %v323 = vsub.f32 %v54, %v322
    %324 = vmatmul.mubr.f32.gmra.mrb[0].mxu0 %v323
    %v325 = vpop.f32.mrb[0].mxu0
    %v326 = vadd.f32 %v239, %v325
    %v327 = vpop.f32.mrb[0].mxu0
    %328 = vdwg.mxu0
    %329 = vmatprep.subr.mxu0 0.0
    %v330 = vand.u32 %v31, 4294901760
    %331 = vmatpush1.msra.mxu0 %v330
    %332 = vmatprep.subr.mxu0 0.0
    %v333 = vand.u32 %v32, 4294901760
    %334 = vmatpush1.msra.mxu0 %v333
    %335 = vmatprep.subr.mxu0 0.0
    %v336 = vand.u32 %v33, 4294901760
    %337 = vmatpush1.msra.mxu0 %v336
    %338 = vmatprep.subr.mxu0 0.0
    %v339 = vand.u32 %v34, 4294901760
    %340 = vmatpush1.msra.mxu0 %v339
    %341 = vmatprep.subr.mxu0 0.0
    %342 = vmatpush1.msra.mxu0 0.0
    %343 = vmatprep.subr.mxu0 0.0
    %344 = vmatpush1.msra.mxu0 0.0
    %345 = vmatprep.subr.mxu0 0.0
    %346 = vmatpush1.msra.mxu0 0.0
    %347 = vmatprep.subr.mxu0 0.0
    %348 = vmatpush1.msra.mxu0 0.0
    %349 = vmatprep.subr.mxu0 0.0
    %350 = vmatpush1.msra.mxu0 0.0
    %351 = vmatprep.subr.mxu0 0.0
    %352 = vmatpush1.msra.mxu0 0.0
    %353 = vmatprep.subr.mxu0 0.0
    %354 = vmatpush1.msra.mxu0 0.0
    %355 = vmatprep.subr.mxu0 0.0
    %356 = vmatpush1.msra.mxu0 0.0
    %357 = vmatprep.subr.mxu0 0.0
    %358 = vmatpush1.msra.mxu0 0.0
    %359 = vmatprep.subr.mxu0 0.0
    %360 = vmatpush1.msra.mxu0 0.0
    %361 = vmatprep.subr.mxu0 0.0
    %362 = vmatpush1.msra.mxu0 0.0
    %363 = vmatprep.subr.mxu0 0.0
    %364 = vmatpush1.msra.mxu0 0.0
    %365 = vmatprep.subr.mxu0 0.0
    %366 = vmatpush1.msra.mxu0 0.0
    %367 = vmatprep.subr.mxu0 0.0
    %368 = vmatpush1.msra.mxu0 0.0
    %369 = vmatprep.subr.mxu0 0.0
    %370 = vmatpush1.msra.mxu0 0.0
    %371 = vmatprep.subr.mxu0 0.0
    %372 = vmatpush1.msra.mxu0 0.0
    %373 = vmatprep.subr.mxu0 0.0
    %374 = vmatpush1.msra.mxu0 0.0
    %375 = vmatprep.subr.mxu0 0.0
    %376 = vmatpush1.msra.mxu0 0.0
    %377 = vmatprep.subr.mxu0 0.0
    %378 = vmatpush1.msra.mxu0 0.0
    %379 = vmatprep.subr.mxu0 0.0
    %380 = vmatpush1.msra.mxu0 0.0
    %381 = vmatprep.subr.mxu0 0.0
    %382 = vmatpush1.msra.mxu0 0.0
    %383 = vmatprep.subr.mxu0 0.0
    %384 = vmatpush1.msra.mxu0 0.0
    %385 = vmatprep.subr.mxu0 0.0
    %386 = vmatpush1.msra.mxu0 0.0
    %387 = vmatprep.subr.mxu0 0.0
    %388 = vmatpush1.msra.mxu0 0.0
    %389 = vmatprep.subr.mxu0 0.0
    %390 = vmatpush1.msra.mxu0 0.0
    %391 = vmatprep.subr.mxu0 0.0
    %392 = vmatpush1.msra.mxu0 0.0
    %393 = vmatprep.subr.mxu0 0.0
    %394 = vmatpush1.msra.mxu0 0.0
    %395 = vmatprep.subr.mxu0 0.0
    %396 = vmatpush1.msra.mxu0 0.0
    %397 = vmatprep.mubr.f32.mxu0 0.0
    %v398 = vand.u32 %v51, 4294901760
    %v399 = vsub.f32 %v51, %v398
    %v400 = vand.u32 %v399, 4294901760
    %401 = vmatmul.mubr.f32.gmra.mrb[0].mxu0 %v400
    %v402 = vpop.f32.mrb[0].mxu0
    %v403 = vadd.f32 %v319, %v402
    %v404 = vpop.f32.mrb[0].mxu0
    %405 = vmatprep.mubr.f32.mxu0 0.0
    %v406 = vand.u32 %v54, 4294901760
    %v407 = vsub.f32 %v54, %v406
    %v408 = vand.u32 %v407, 4294901760
    %409 = vmatmul.mubr.f32.gmra.mrb[0].mxu0 %v408
    %v410 = vpop.f32.mrb[0].mxu0
    %v411 = vadd.f32 %v326, %v410
    %v412 = vpop.f32.mrb[0].mxu0
    %413 = vdwg.mxu0
    %414 = vmatprep.subr.mxu0 0.0
    %v415 = vand.u32 %v31, 4294901760
    %v416 = vsub.f32 %v31, %v415
    %v417 = vand.u32 %v416, 4294901760
    %418 = vmatpush1.msra.mxu0 %v417
    %419 = vmatprep.subr.mxu0 0.0
    %v420 = vand.u32 %v32, 4294901760
    %v421 = vsub.f32 %v32, %v420
    %v422 = vand.u32 %v421, 4294901760
    %423 = vmatpush1.msra.mxu0 %v422
    %424 = vmatprep.subr.mxu0 0.0
    %v425 = vand.u32 %v33, 4294901760
    %v426 = vsub.f32 %v33, %v425
    %v427 = vand.u32 %v426, 4294901760
    %428 = vmatpush1.msra.mxu0 %v427
    %429 = vmatprep.subr.mxu0 0.0
    %v430 = vand.u32 %v34, 4294901760
    %v431 = vsub.f32 %v34, %v430
    %v432 = vand.u32 %v431, 4294901760
    %433 = vmatpush1.msra.mxu0 %v432
    %434 = vmatprep.subr.mxu0 0.0
    %435 = vmatpush1.msra.mxu0 0.0
    %436 = vmatprep.subr.mxu0 0.0
    %437 = vmatpush1.msra.mxu0 0.0
    %438 = vmatprep.subr.mxu0 0.0
    %439 = vmatpush1.msra.mxu0 0.0
    %440 = vmatprep.subr.mxu0 0.0
    %441 = vmatpush1.msra.mxu0 0.0
    %442 = vmatprep.subr.mxu0 0.0
    %443 = vmatpush1.msra.mxu0 0.0
    %444 = vmatprep.subr.mxu0 0.0
    %445 = vmatpush1.msra.mxu0 0.0
    %446 = vmatprep.subr.mxu0 0.0
    %447 = vmatpush1.msra.mxu0 0.0
    %448 = vmatprep.subr.mxu0 0.0
    %449 = vmatpush1.msra.mxu0 0.0
    %450 = vmatprep.subr.mxu0 0.0
    %451 = vmatpush1.msra.mxu0 0.0
    %452 = vmatprep.subr.mxu0 0.0
    %453 = vmatpush1.msra.mxu0 0.0
    %454 = vmatprep.subr.mxu0 0.0
    %455 = vmatpush1.msra.mxu0 0.0
    %456 = vmatprep.subr.mxu0 0.0
    %457 = vmatpush1.msra.mxu0 0.0
    %458 = vmatprep.subr.mxu0 0.0
    %459 = vmatpush1.msra.mxu0 0.0
    %460 = vmatprep.subr.mxu0 0.0
    %461 = vmatpush1.msra.mxu0 0.0
    %462 = vmatprep.subr.mxu0 0.0
    %463 = vmatpush1.msra.mxu0 0.0
    %464 = vmatprep.subr.mxu0 0.0
    %465 = vmatpush1.msra.mxu0 0.0
    %466 = vmatprep.subr.mxu0 0.0
    %467 = vmatpush1.msra.mxu0 0.0
    %468 = vmatprep.subr.mxu0 0.0
    %469 = vmatpush1.msra.mxu0 0.0
    %470 = vmatprep.subr.mxu0 0.0
    %471 = vmatpush1.msra.mxu0 0.0
    %472 = vmatprep.subr.mxu0 0.0
    %473 = vmatpush1.msra.mxu0 0.0
    %474 = vmatprep.subr.mxu0 0.0
    %475 = vmatpush1.msra.mxu0 0.0
    %476 = vmatprep.subr.mxu0 0.0
    %477 = vmatpush1.msra.mxu0 0.0
    %478 = vmatprep.subr.mxu0 0.0
    %479 = vmatpush1.msra.mxu0 0.0
    %480 = vmatprep.subr.mxu0 0.0
    %481 = vmatpush1.msra.mxu0 0.0
    %482 = vmatprep.subr.mxu0 0.0
    %483 = vmatpush1.msra.mxu0 0.0
    %484 = vmatprep.subr.mxu0 0.0
    %485 = vmatpush1.msra.mxu0 0.0
    %486 = vmatprep.subr.mxu0 0.0
    %487 = vmatpush1.msra.mxu0 0.0
    %488 = vmatprep.subr.mxu0 0.0
    %489 = vmatpush1.msra.mxu0 0.0
    %490 = vmatprep.mubr.f32.mxu0 0.0
    %v491 = vand.u32 %v51, 4294901760
    %492 = vmatmul.mubr.f32.gmra.mrb[0].mxu0 %v491
    %v493 = vpop.f32.mrb[0].mxu0
    %v494 = vadd.f32 %v403, %v493
    %v495 = vpop.f32.mrb[0].mxu0
    %496 = vmatprep.mubr.f32.mxu0 0.0
    %v497 = vand.u32 %v54, 4294901760
    %498 = vmatmul.mubr.f32.gmra.mrb[0].mxu0 %v497
    %v499 = vpop.f32.mrb[0].mxu0
    %v500 = vadd.f32 %v411, %v499
    %v501 = vpop.f32.mrb[0].mxu0
    %502 = vdwg.mxu0
    %503 = vmatprep.subr.mxu0 0.0
    %v504 = vand.u32 %v31, 4294901760
    %505 = vmatpush1.msra.mxu0 %v504
    %506 = vmatprep.subr.mxu0 0.0
    %v507 = vand.u32 %v32, 4294901760
    %508 = vmatpush1.msra.mxu0 %v507
    %509 = vmatprep.subr.mxu0 0.0
    %v510 = vand.u32 %v33, 4294901760
    %511 = vmatpush1.msra.mxu0 %v510
    %512 = vmatprep.subr.mxu0 0.0
    %v513 = vand.u32 %v34, 4294901760
    %514 = vmatpush1.msra.mxu0 %v513
    %515 = vmatprep.subr.mxu0 0.0
    %516 = vmatpush1.msra.mxu0 0.0
    %517 = vmatprep.subr.mxu0 0.0
    %518 = vmatpush1.msra.mxu0 0.0
    %519 = vmatprep.subr.mxu0 0.0
    %520 = vmatpush1.msra.mxu0 0.0
    %521 = vmatprep.subr.mxu0 0.0
    %522 = vmatpush1.msra.mxu0 0.0
    %523 = vmatprep.subr.mxu0 0.0
    %524 = vmatpush1.msra.mxu0 0.0
    %525 = vmatprep.subr.mxu0 0.0
    %526 = vmatpush1.msra.mxu0 0.0
    %527 = vmatprep.subr.mxu0 0.0
    %528 = vmatpush1.msra.mxu0 0.0
    %529 = vmatprep.subr.mxu0 0.0
    %530 = vmatpush1.msra.mxu0 0.0
    %531 = vmatprep.subr.mxu0 0.0
    %532 = vmatpush1.msra.mxu0 0.0
    %533 = vmatprep.subr.mxu0 0.0
    %534 = vmatpush1.msra.mxu0 0.0
    %535 = vmatprep.subr.mxu0 0.0
    %536 = vmatpush1.msra.mxu0 0.0
    %537 = vmatprep.subr.mxu0 0.0
    %538 = vmatpush1.msra.mxu0 0.0
    %539 = vmatprep.subr.mxu0 0.0
    %540 = vmatpush1.msra.mxu0 0.0
    %541 = vmatprep.subr.mxu0 0.0
    %542 = vmatpush1.msra.mxu0 0.0
    %543 = vmatprep.subr.mxu0 0.0
    %544 = vmatpush1.msra.mxu0 0.0
    %545 = vmatprep.subr.mxu0 0.0
    %546 = vmatpush1.msra.mxu0 0.0
    %547 = vmatprep.subr.mxu0 0.0
    %548 = vmatpush1.msra.mxu0 0.0
    %549 = vmatprep.subr.mxu0 0.0
    %550 = vmatpush1.msra.mxu0 0.0
    %551 = vmatprep.subr.mxu0 0.0
    %552 = vmatpush1.msra.mxu0 0.0
    %553 = vmatprep.subr.mxu0 0.0
    %554 = vmatpush1.msra.mxu0 0.0
    %555 = vmatprep.subr.mxu0 0.0
    %556 = vmatpush1.msra.mxu0 0.0
    %557 = vmatprep.subr.mxu0 0.0
    %558 = vmatpush1.msra.mxu0 0.0
    %559 = vmatprep.subr.mxu0 0.0
    %560 = vmatpush1.msra.mxu0 0.0
    %561 = vmatprep.subr.mxu0 0.0
    %562 = vmatpush1.msra.mxu0 0.0
    %563 = vmatprep.subr.mxu0 0.0
    %564 = vmatpush1.msra.mxu0 0.0
    %565 = vmatprep.subr.mxu0 0.0
    %566 = vmatpush1.msra.mxu0 0.0
    %567 = vmatprep.subr.mxu0 0.0
    %568 = vmatpush1.msra.mxu0 0.0
    %569 = vmatprep.subr.mxu0 0.0
    %570 = vmatpush1.msra.mxu0 0.0
    %571 = vmatprep.mubr.f32.mxu0 0.0
    %v572 = vand.u32 %v51, 4294901760
    %573 = vmatmul.mubr.f32.gmra.mrb[0].mxu0 %v572
    %v574 = vpop.f32.mrb[0].mxu0
    %v575 = vadd.f32 %v494, %v574
    %v576 = vpop.f32.mrb[0].mxu0
    %577 = vmatprep.mubr.f32.mxu0 0.0
    %v578 = vand.u32 %v54, 4294901760
    %579 = vmatmul.mubr.f32.gmra.mrb[0].mxu0 %v578
    %v580 = vpop.f32.mrb[0].mxu0
    %v581 = vadd.f32 %v500, %v580
    %v582 = vpop.f32.mrb[0].mxu0
    %583 = vdwg.mxu0
    %v584 = vlaneseq
    %v585 = vshrl.u32 %v584, 7
    %v586 = vadd.s32 %v585, 8
    %v587 = vmul.u32 %v36, 2
    %vm588 = vcmp.ge.s32.totalorder %v585, %v587
    %vm589 = vcmp.ge.s32.totalorder %v586, %v587
    %v590 = vadd.s32 %v587, 2
    %vm591 = vcmp.lt.s32.totalorder %v585, %v590
    %vm592 = vcmp.lt.s32.totalorder %v586, %v590
    %vm593 = vmand %vm588, %vm591
    %vm594 = vmand %vm589, %vm592
    %v595 = vsel %vm593, 1, 0
    %v596 = vsel %vm594, 1, 0
    %v597 = vcvt.s32.f32 %v595
    %v598 = vcvt.s32.f32 %v596
    %v599 = vld [vmem:[%s2] sm:$0xff]
    %vm600 = vcmask 64512
    %v602 = vsel %vm600, %v597, 0
    %v605 = vsel %vm600, %v598, 0
    %607 = vmatprep.subr.mxu0 0.0
    %v608 = vand.u32 %v599, 4294901760
    %609 = vmatpush1.msra.mxu0 %v608
    %610 = vmatprep.subr.mxu0 0.0
    %611 = vmatpush1.msra.mxu0 0.0
    %612 = vmatprep.subr.mxu0 0.0
    %613 = vmatpush1.msra.mxu0 0.0
    %614 = vmatprep.subr.mxu0 0.0
    %615 = vmatpush1.msra.mxu0 0.0
    %616 = vmatprep.subr.mxu0 0.0
    %617 = vmatpush1.msra.mxu0 0.0
    %618 = vmatprep.subr.mxu0 0.0
    %619 = vmatpush1.msra.mxu0 0.0
    %620 = vmatprep.subr.mxu0 0.0
    %621 = vmatpush1.msra.mxu0 0.0
    %622 = vmatprep.subr.mxu0 0.0
    %623 = vmatpush1.msra.mxu0 0.0
    %624 = vmatprep.subr.mxu0 0.0
    %625 = vmatpush1.msra.mxu0 0.0
    %626 = vmatprep.subr.mxu0 0.0
    %627 = vmatpush1.msra.mxu0 0.0
    %628 = vmatprep.subr.mxu0 0.0
    %629 = vmatpush1.msra.mxu0 0.0
    %630 = vmatprep.subr.mxu0 0.0
    %631 = vmatpush1.msra.mxu0 0.0
    %632 = vmatprep.subr.mxu0 0.0
    %633 = vmatpush1.msra.mxu0 0.0
    %634 = vmatprep.subr.mxu0 0.0
    %635 = vmatpush1.msra.mxu0 0.0
    %636 = vmatprep.subr.mxu0 0.0
    %637 = vmatpush1.msra.mxu0 0.0
    %638 = vmatprep.subr.mxu0 0.0
    %639 = vmatpush1.msra.mxu0 0.0
    %640 = vmatprep.subr.mxu0 0.0
    %641 = vmatpush1.msra.mxu0 0.0
    %642 = vmatprep.subr.mxu0 0.0
    %643 = vmatpush1.msra.mxu0 0.0
    %644 = vmatprep.subr.mxu0 0.0
    %645 = vmatpush1.msra.mxu0 0.0
    %646 = vmatprep.subr.mxu0 0.0
    %647 = vmatpush1.msra.mxu0 0.0
    %648 = vmatprep.subr.mxu0 0.0
    %649 = vmatpush1.msra.mxu0 0.0
    %650 = vmatprep.subr.mxu0 0.0
    %651 = vmatpush1.msra.mxu0 0.0
    %652 = vmatprep.subr.mxu0 0.0
    %653 = vmatpush1.msra.mxu0 0.0
    %654 = vmatprep.subr.mxu0 0.0
    %655 = vmatpush1.msra.mxu0 0.0
    %656 = vmatprep.subr.mxu0 0.0
    %657 = vmatpush1.msra.mxu0 0.0
    %658 = vmatprep.subr.mxu0 0.0
    %659 = vmatpush1.msra.mxu0 0.0
    %660 = vmatprep.subr.mxu0 0.0
    %661 = vmatpush1.msra.mxu0 0.0
    %662 = vmatprep.subr.mxu0 0.0
    %663 = vmatpush1.msra.mxu0 0.0
    %664 = vmatprep.subr.mxu0 0.0
    %665 = vmatpush1.msra.mxu0 0.0
    %666 = vmatprep.subr.mxu0 0.0
    %667 = vmatpush1.msra.mxu0 0.0
    %668 = vmatprep.subr.mxu0 0.0
    %669 = vmatpush1.msra.mxu0 0.0
    %670 = vmatprep.subr.mxu0 0.0
    %671 = vmatpush1.msra.mxu0 0.0
    %672 = vmatprep.mubr.f32.mxu0 0.0
    %v673 = vand.u32 %v602, 4294901760
    %v674 = vsub.f32 %v602, %v673
    %v675 = vand.u32 %v674, 4294901760
    %v676 = vsub.f32 %v674, %v675
    %v677 = vand.u32 %v676, 4294901760
    %678 = vmatmul.mubr.f32.gmra.mrb[0].mxu0 %v677
    %v679 = vpop.f32.mrb[0].mxu0
    %v680 = vadd.f32 0.0, %v679
    %v681 = vpop.f32.mrb[0].mxu0
    %682 = vmatprep.mubr.f32.mxu0 0.0
    %v683 = vand.u32 %v605, 4294901760
    %v684 = vsub.f32 %v605, %v683
    %v685 = vand.u32 %v684, 4294901760
    %v686 = vsub.f32 %v684, %v685
    %v687 = vand.u32 %v686, 4294901760
    %688 = vmatmul.mubr.f32.gmra.mrb[0].mxu0 %v687
    %v689 = vpop.f32.mrb[0].mxu0
    %v690 = vadd.f32 0.0, %v689
    %v691 = vpop.f32.mrb[0].mxu0
    %692 = vdwg.mxu0
    %693 = vmatprep.subr.mxu0 0.0
    %v694 = vand.u32 %v599, 4294901760
    %v695 = vsub.f32 %v599, %v694
    %v696 = vand.u32 %v695, 4294901760
    %v697 = vsub.f32 %v695, %v696
    %v698 = vand.u32 %v697, 4294901760
    %699 = vmatpush1.msra.mxu0 %v698
    %700 = vmatprep.subr.mxu0 0.0
    %701 = vmatpush1.msra.mxu0 0.0
    %702 = vmatprep.subr.mxu0 0.0
    %703 = vmatpush1.msra.mxu0 0.0
    %704 = vmatprep.subr.mxu0 0.0
    %705 = vmatpush1.msra.mxu0 0.0
    %706 = vmatprep.subr.mxu0 0.0
    %707 = vmatpush1.msra.mxu0 0.0
    %708 = vmatprep.subr.mxu0 0.0
    %709 = vmatpush1.msra.mxu0 0.0
    %710 = vmatprep.subr.mxu0 0.0
    %711 = vmatpush1.msra.mxu0 0.0
    %712 = vmatprep.subr.mxu0 0.0
    %713 = vmatpush1.msra.mxu0 0.0
    %714 = vmatprep.subr.mxu0 0.0
    %715 = vmatpush1.msra.mxu0 0.0
    %716 = vmatprep.subr.mxu0 0.0
    %717 = vmatpush1.msra.mxu0 0.0
    %718 = vmatprep.subr.mxu0 0.0
    %719 = vmatpush1.msra.mxu0 0.0
    %720 = vmatprep.subr.mxu0 0.0
    %721 = vmatpush1.msra.mxu0 0.0
    %722 = vmatprep.subr.mxu0 0.0
    %723 = vmatpush1.msra.mxu0 0.0
    %724 = vmatprep.subr.mxu0 0.0
    %725 = vmatpush1.msra.mxu0 0.0
    %726 = vmatprep.subr.mxu0 0.0
    %727 = vmatpush1.msra.mxu0 0.0
    %728 = vmatprep.subr.mxu0 0.0
    %729 = vmatpush1.msra.mxu0 0.0
    %730 = vmatprep.subr.mxu0 0.0
    %731 = vmatpush1.msra.mxu0 0.0
    %732 = vmatprep.subr.mxu0 0.0
    %733 = vmatpush1.msra.mxu0 0.0
    %734 = vmatprep.subr.mxu0 0.0
    %735 = vmatpush1.msra.mxu0 0.0
    %736 = vmatprep.subr.mxu0 0.0
    %737 = vmatpush1.msra.mxu0 0.0
    %738 = vmatprep.subr.mxu0 0.0
    %739 = vmatpush1.msra.mxu0 0.0
    %740 = vmatprep.subr.mxu0 0.0
    %741 = vmatpush1.msra.mxu0 0.0
    %742 = vmatprep.subr.mxu0 0.0
    %743 = vmatpush1.msra.mxu0 0.0
    %744 = vmatprep.subr.mxu0 0.0
    %745 = vmatpush1.msra.mxu0 0.0
    %746 = vmatprep.subr.mxu0 0.0
    %747 = vmatpush1.msra.mxu0 0.0
    %748 = vmatprep.subr.mxu0 0.0
    %749 = vmatpush1.msra.mxu0 0.0
    %750 = vmatprep.subr.mxu0 0.0
    %751 = vmatpush1.msra.mxu0 0.0
    %752 = vmatprep.subr.mxu0 0.0
    %753 = vmatpush1.msra.mxu0 0.0
    %754 = vmatprep.subr.mxu0 0.0
    %755 = vmatpush1.msra.mxu0 0.0
    %756 = vmatprep.subr.mxu0 0.0
    %757 = vmatpush1.msra.mxu0 0.0
    %758 = vmatprep.subr.mxu0 0.0
    %759 = vmatpush1.msra.mxu0 0.0
    %760 = vmatprep.subr.mxu0 0.0
    %761 = vmatpush1.msra.mxu0 0.0
    %762 = vmatprep.mubr.f32.mxu0 0.0
    %v763 = vand.u32 %v602, 4294901760
    %764 = vmatmul.mubr.f32.gmra.mrb[0].mxu0 %v763
    %v765 = vpop.f32.mrb[0].mxu0
    %v766 = vadd.f32 %v680, %v765
    %v767 = vpop.f32.mrb[0].mxu0
    %768 = vmatprep.mubr.f32.mxu0 0.0
    %v769 = vand.u32 %v605, 4294901760
    %770 = vmatmul.mubr.f32.gmra.mrb[0].mxu0 %v769
    %v771 = vpop.f32.mrb[0].mxu0
    %v772 = vadd.f32 %v690, %v771
    %v773 = vpop.f32.mrb[0].mxu0
    %774 = vdwg.mxu0
    %775 = vmatprep.subr.mxu0 0.0
    %v776 = vand.u32 %v599, 4294901760
    %v777 = vsub.f32 %v599, %v776
    %778 = vmatpush1.msra.mxu0 %v777
    %779 = vmatprep.subr.mxu0 0.0
    %780 = vmatpush1.msra.mxu0 0.0
    %781 = vmatprep.subr.mxu0 0.0
    %782 = vmatpush1.msra.mxu0 0.0
    %783 = vmatprep.subr.mxu0 0.0
    %784 = vmatpush1.msra.mxu0 0.0
    %785 = vmatprep.subr.mxu0 0.0
    %786 = vmatpush1.msra.mxu0 0.0
    %787 = vmatprep.subr.mxu0 0.0
    %788 = vmatpush1.msra.mxu0 0.0
    %789 = vmatprep.subr.mxu0 0.0
    %790 = vmatpush1.msra.mxu0 0.0
    %791 = vmatprep.subr.mxu0 0.0
    %792 = vmatpush1.msra.mxu0 0.0
    %793 = vmatprep.subr.mxu0 0.0
    %794 = vmatpush1.msra.mxu0 0.0
    %795 = vmatprep.subr.mxu0 0.0
    %796 = vmatpush1.msra.mxu0 0.0
    %797 = vmatprep.subr.mxu0 0.0
    %798 = vmatpush1.msra.mxu0 0.0
    %799 = vmatprep.subr.mxu0 0.0
    %800 = vmatpush1.msra.mxu0 0.0
    %801 = vmatprep.subr.mxu0 0.0
    %802 = vmatpush1.msra.mxu0 0.0
    %803 = vmatprep.subr.mxu0 0.0
    %804 = vmatpush1.msra.mxu0 0.0
    %805 = vmatprep.subr.mxu0 0.0
    %806 = vmatpush1.msra.mxu0 0.0
    %807 = vmatprep.subr.mxu0 0.0
    %808 = vmatpush1.msra.mxu0 0.0
    %809 = vmatprep.subr.mxu0 0.0
    %810 = vmatpush1.msra.mxu0 0.0
    %811 = vmatprep.subr.mxu0 0.0
    %812 = vmatpush1.msra.mxu0 0.0
    %813 = vmatprep.subr.mxu0 0.0
    %814 = vmatpush1.msra.mxu0 0.0
    %815 = vmatprep.subr.mxu0 0.0
    %816 = vmatpush1.msra.mxu0 0.0
    %817 = vmatprep.subr.mxu0 0.0
    %818 = vmatpush1.msra.mxu0 0.0
    %819 = vmatprep.subr.mxu0 0.0
    %820 = vmatpush1.msra.mxu0 0.0
    %821 = vmatprep.subr.mxu0 0.0
    %822 = vmatpush1.msra.mxu0 0.0
    %823 = vmatprep.subr.mxu0 0.0
    %824 = vmatpush1.msra.mxu0 0.0
    %825 = vmatprep.subr.mxu0 0.0
    %826 = vmatpush1.msra.mxu0 0.0
    %827 = vmatprep.subr.mxu0 0.0
    %828 = vmatpush1.msra.mxu0 0.0
    %829 = vmatprep.subr.mxu0 0.0
    %830 = vmatpush1.msra.mxu0 0.0
    %831 = vmatprep.subr.mxu0 0.0
    %832 = vmatpush1.msra.mxu0 0.0
    %833 = vmatprep.subr.mxu0 0.0
    %834 = vmatpush1.msra.mxu0 0.0
    %835 = vmatprep.subr.mxu0 0.0
    %836 = vmatpush1.msra.mxu0 0.0
    %837 = vmatprep.subr.mxu0 0.0
    %838 = vmatpush1.msra.mxu0 0.0
    %839 = vmatprep.subr.mxu0 0.0
    %840 = vmatpush1.msra.mxu0 0.0
    %841 = vmatprep.mubr.f32.mxu0 0.0
    %v842 = vand.u32 %v602, 4294901760
    %v843 = vsub.f32 %v602, %v842
    %844 = vmatmul.mubr.f32.gmra.mrb[0].mxu0 %v843
    %v845 = vpop.f32.mrb[0].mxu0
    %v846 = vadd.f32 %v766, %v845
    %v847 = vpop.f32.mrb[0].mxu0
    %848 = vmatprep.mubr.f32.mxu0 0.0
    %v849 = vand.u32 %v605, 4294901760
    %v850 = vsub.f32 %v605, %v849
    %851 = vmatmul.mubr.f32.gmra.mrb[0].mxu0 %v850
    %v852 = vpop.f32.mrb[0].mxu0
    %v853 = vadd.f32 %v772, %v852
    %v854 = vpop.f32.mrb[0].mxu0
    %855 = vdwg.mxu0
    %856 = vmatprep.subr.mxu0 0.0
    %v857 = vand.u32 %v599, 4294901760
    %858 = vmatpush1.msra.mxu0 %v857
    %859 = vmatprep.subr.mxu0 0.0
    %860 = vmatpush1.msra.mxu0 0.0
    %861 = vmatprep.subr.mxu0 0.0
    %862 = vmatpush1.msra.mxu0 0.0
    %863 = vmatprep.subr.mxu0 0.0
    %864 = vmatpush1.msra.mxu0 0.0
    %865 = vmatprep.subr.mxu0 0.0
    %866 = vmatpush1.msra.mxu0 0.0
    %867 = vmatprep.subr.mxu0 0.0
    %868 = vmatpush1.msra.mxu0 0.0
    %869 = vmatprep.subr.mxu0 0.0
    %870 = vmatpush1.msra.mxu0 0.0
    %871 = vmatprep.subr.mxu0 0.0
    %872 = vmatpush1.msra.mxu0 0.0
    %873 = vmatprep.subr.mxu0 0.0
    %874 = vmatpush1.msra.mxu0 0.0
    %875 = vmatprep.subr.mxu0 0.0
    %876 = vmatpush1.msra.mxu0 0.0
    %877 = vmatprep.subr.mxu0 0.0
    %878 = vmatpush1.msra.mxu0 0.0
    %879 = vmatprep.subr.mxu0 0.0
    %880 = vmatpush1.msra.mxu0 0.0
    %881 = vmatprep.subr.mxu0 0.0
    %882 = vmatpush1.msra.mxu0 0.0
    %883 = vmatprep.subr.mxu0 0.0
    %884 = vmatpush1.msra.mxu0 0.0
    %885 = vmatprep.subr.mxu0 0.0
    %886 = vmatpush1.msra.mxu0 0.0
    %887 = vmatprep.subr.mxu0 0.0
    %888 = vmatpush1.msra.mxu0 0.0
    %889 = vmatprep.subr.mxu0 0.0
    %890 = vmatpush1.msra.mxu0 0.0
    %891 = vmatprep.subr.mxu0 0.0
    %892 = vmatpush1.msra.mxu0 0.0
    %893 = vmatprep.subr.mxu0 0.0
    %894 = vmatpush1.msra.mxu0 0.0
    %895 = vmatprep.subr.mxu0 0.0
    %896 = vmatpush1.msra.mxu0 0.0
    %897 = vmatprep.subr.mxu0 0.0
    %898 = vmatpush1.msra.mxu0 0.0
    %899 = vmatprep.subr.mxu0 0.0
    %900 = vmatpush1.msra.mxu0 0.0
    %901 = vmatprep.subr.mxu0 0.0
    %902 = vmatpush1.msra.mxu0 0.0
    %903 = vmatprep.subr.mxu0 0.0
    %904 = vmatpush1.msra.mxu0 0.0
    %905 = vmatprep.subr.mxu0 0.0
    %906 = vmatpush1.msra.mxu0 0.0
    %907 = vmatprep.subr.mxu0 0.0
    %908 = vmatpush1.msra.mxu0 0.0
    %909 = vmatprep.subr.mxu0 0.0
    %910 = vmatpush1.msra.mxu0 0.0
    %911 = vmatprep.subr.mxu0 0.0
    %912 = vmatpush1.msra.mxu0 0.0
    %913 = vmatprep.subr.mxu0 0.0
    %914 = vmatpush1.msra.mxu0 0.0
    %915 = vmatprep.subr.mxu0 0.0
    %916 = vmatpush1.msra.mxu0 0.0
    %917 = vmatprep.subr.mxu0 0.0
    %918 = vmatpush1.msra.mxu0 0.0
    %919 = vmatprep.subr.mxu0 0.0
    %920 = vmatpush1.msra.mxu0 0.0
    %921 = vmatprep.mubr.f32.mxu0 0.0
    %v922 = vand.u32 %v602, 4294901760
    %v923 = vsub.f32 %v602, %v922
    %v924 = vand.u32 %v923, 4294901760
    %925 = vmatmul.mubr.f32.gmra.mrb[0].mxu0 %v924
    %v926 = vpop.f32.mrb[0].mxu0
    %v927 = vadd.f32 %v846, %v926
    %v928 = vpop.f32.mrb[0].mxu0
    %929 = vmatprep.mubr.f32.mxu0 0.0
    %v930 = vand.u32 %v605, 4294901760
    %v931 = vsub.f32 %v605, %v930
    %v932 = vand.u32 %v931, 4294901760
    %933 = vmatmul.mubr.f32.gmra.mrb[0].mxu0 %v932
    %v934 = vpop.f32.mrb[0].mxu0
    %v935 = vadd.f32 %v853, %v934
    %v936 = vpop.f32.mrb[0].mxu0
    %937 = vdwg.mxu0
    %938 = vmatprep.subr.mxu0 0.0
    %v939 = vand.u32 %v599, 4294901760
    %v940 = vsub.f32 %v599, %v939
    %v941 = vand.u32 %v940, 4294901760
    %942 = vmatpush1.msra.mxu0 %v941
    %943 = vmatprep.subr.mxu0 0.0
    %944 = vmatpush1.msra.mxu0 0.0
    %945 = vmatprep.subr.mxu0 0.0
    %946 = vmatpush1.msra.mxu0 0.0
    %947 = vmatprep.subr.mxu0 0.0
    %948 = vmatpush1.msra.mxu0 0.0
    %949 = vmatprep.subr.mxu0 0.0
    %950 = vmatpush1.msra.mxu0 0.0
    %951 = vmatprep.subr.mxu0 0.0
    %952 = vmatpush1.msra.mxu0 0.0
    %953 = vmatprep.subr.mxu0 0.0
    %954 = vmatpush1.msra.mxu0 0.0
    %955 = vmatprep.subr.mxu0 0.0
    %956 = vmatpush1.msra.mxu0 0.0
    %957 = vmatprep.subr.mxu0 0.0
    %958 = vmatpush1.msra.mxu0 0.0
    %959 = vmatprep.subr.mxu0 0.0
    %960 = vmatpush1.msra.mxu0 0.0
    %961 = vmatprep.subr.mxu0 0.0
    %962 = vmatpush1.msra.mxu0 0.0
    %963 = vmatprep.subr.mxu0 0.0
    %964 = vmatpush1.msra.mxu0 0.0
    %965 = vmatprep.subr.mxu0 0.0
    %966 = vmatpush1.msra.mxu0 0.0
    %967 = vmatprep.subr.mxu0 0.0
    %968 = vmatpush1.msra.mxu0 0.0
    %969 = vmatprep.subr.mxu0 0.0
    %970 = vmatpush1.msra.mxu0 0.0
    %971 = vmatprep.subr.mxu0 0.0
    %972 = vmatpush1.msra.mxu0 0.0
    %973 = vmatprep.subr.mxu0 0.0
    %974 = vmatpush1.msra.mxu0 0.0
    %975 = vmatprep.subr.mxu0 0.0
    %976 = vmatpush1.msra.mxu0 0.0
    %977 = vmatprep.subr.mxu0 0.0
    %978 = vmatpush1.msra.mxu0 0.0
    %979 = vmatprep.subr.mxu0 0.0
    %980 = vmatpush1.msra.mxu0 0.0
    %981 = vmatprep.subr.mxu0 0.0
    %982 = vmatpush1.msra.mxu0 0.0
    %983 = vmatprep.subr.mxu0 0.0
    %984 = vmatpush1.msra.mxu0 0.0
    %985 = vmatprep.subr.mxu0 0.0
    %986 = vmatpush1.msra.mxu0 0.0
    %987 = vmatprep.subr.mxu0 0.0
    %988 = vmatpush1.msra.mxu0 0.0
    %989 = vmatprep.subr.mxu0 0.0
    %990 = vmatpush1.msra.mxu0 0.0
    %991 = vmatprep.subr.mxu0 0.0
    %992 = vmatpush1.msra.mxu0 0.0
    %993 = vmatprep.subr.mxu0 0.0
    %994 = vmatpush1.msra.mxu0 0.0
    %995 = vmatprep.subr.mxu0 0.0
    %996 = vmatpush1.msra.mxu0 0.0
    %997 = vmatprep.subr.mxu0 0.0
    %998 = vmatpush1.msra.mxu0 0.0
    %999 = vmatprep.subr.mxu0 0.0
    %1000 = vmatpush1.msra.mxu0 0.0
    %1001 = vmatprep.subr.mxu0 0.0
    %1002 = vmatpush1.msra.mxu0 0.0
    %1003 = vmatprep.subr.mxu0 0.0
    %1004 = vmatpush1.msra.mxu0 0.0
    %1005 = vmatprep.mubr.f32.mxu0 0.0
    %v1006 = vand.u32 %v602, 4294901760
    %1007 = vmatmul.mubr.f32.gmra.mrb[0].mxu0 %v1006
    %v1008 = vpop.f32.mrb[0].mxu0
    %v1009 = vadd.f32 %v927, %v1008
    %v1010 = vpop.f32.mrb[0].mxu0
    %1011 = vmatprep.mubr.f32.mxu0 0.0
    %v1012 = vand.u32 %v605, 4294901760
    %1013 = vmatmul.mubr.f32.gmra.mrb[0].mxu0 %v1012
    %v1014 = vpop.f32.mrb[0].mxu0
    %v1015 = vadd.f32 %v935, %v1014
    %v1016 = vpop.f32.mrb[0].mxu0
    %1017 = vdwg.mxu0
    %1018 = vmatprep.subr.mxu0 0.0
    %v1019 = vand.u32 %v599, 4294901760
    %1020 = vmatpush1.msra.mxu0 %v1019
    %1021 = vmatprep.subr.mxu0 0.0
    %1022 = vmatpush1.msra.mxu0 0.0
    %1023 = vmatprep.subr.mxu0 0.0
    %1024 = vmatpush1.msra.mxu0 0.0
    %1025 = vmatprep.subr.mxu0 0.0
    %1026 = vmatpush1.msra.mxu0 0.0
    %1027 = vmatprep.subr.mxu0 0.0
    %1028 = vmatpush1.msra.mxu0 0.0
    %1029 = vmatprep.subr.mxu0 0.0
    %1030 = vmatpush1.msra.mxu0 0.0
    %1031 = vmatprep.subr.mxu0 0.0
    %1032 = vmatpush1.msra.mxu0 0.0
    %1033 = vmatprep.subr.mxu0 0.0
    %1034 = vmatpush1.msra.mxu0 0.0
    %1035 = vmatprep.subr.mxu0 0.0
    %1036 = vmatpush1.msra.mxu0 0.0
    %1037 = vmatprep.subr.mxu0 0.0
    %1038 = vmatpush1.msra.mxu0 0.0
    %1039 = vmatprep.subr.mxu0 0.0
    %1040 = vmatpush1.msra.mxu0 0.0
    %1041 = vmatprep.subr.mxu0 0.0
    %1042 = vmatpush1.msra.mxu0 0.0
    %1043 = vmatprep.subr.mxu0 0.0
    %1044 = vmatpush1.msra.mxu0 0.0
    %1045 = vmatprep.subr.mxu0 0.0
    %1046 = vmatpush1.msra.mxu0 0.0
    %1047 = vmatprep.subr.mxu0 0.0
    %1048 = vmatpush1.msra.mxu0 0.0
    %1049 = vmatprep.subr.mxu0 0.0
    %1050 = vmatpush1.msra.mxu0 0.0
    %1051 = vmatprep.subr.mxu0 0.0
    %1052 = vmatpush1.msra.mxu0 0.0
    %1053 = vmatprep.subr.mxu0 0.0
    %1054 = vmatpush1.msra.mxu0 0.0
    %1055 = vmatprep.subr.mxu0 0.0
    %1056 = vmatpush1.msra.mxu0 0.0
    %1057 = vmatprep.subr.mxu0 0.0
    %1058 = vmatpush1.msra.mxu0 0.0
    %1059 = vmatprep.subr.mxu0 0.0
    %1060 = vmatpush1.msra.mxu0 0.0
    %1061 = vmatprep.subr.mxu0 0.0
    %1062 = vmatpush1.msra.mxu0 0.0
    %1063 = vmatprep.subr.mxu0 0.0
    %1064 = vmatpush1.msra.mxu0 0.0
    %1065 = vmatprep.subr.mxu0 0.0
    %1066 = vmatpush1.msra.mxu0 0.0
    %1067 = vmatprep.subr.mxu0 0.0
    %1068 = vmatpush1.msra.mxu0 0.0
    %1069 = vmatprep.subr.mxu0 0.0
    %1070 = vmatpush1.msra.mxu0 0.0
    %1071 = vmatprep.subr.mxu0 0.0
    %1072 = vmatpush1.msra.mxu0 0.0
    %1073 = vmatprep.subr.mxu0 0.0
    %1074 = vmatpush1.msra.mxu0 0.0
    %1075 = vmatprep.subr.mxu0 0.0
    %1076 = vmatpush1.msra.mxu0 0.0
    %1077 = vmatprep.subr.mxu0 0.0
    %1078 = vmatpush1.msra.mxu0 0.0
    %1079 = vmatprep.subr.mxu0 0.0
    %1080 = vmatpush1.msra.mxu0 0.0
    %1081 = vmatprep.subr.mxu0 0.0
    %1082 = vmatpush1.msra.mxu0 0.0
    %1083 = vmatprep.mubr.f32.mxu0 0.0
    %v1084 = vand.u32 %v602, 4294901760
    %1085 = vmatmul.mubr.f32.gmra.mrb[0].mxu0 %v1084
    %v1086 = vpop.f32.mrb[0].mxu0
    %v1087 = vadd.f32 %v1009, %v1086
    %v1088 = vpop.f32.mrb[0].mxu0
    %1089 = vmatprep.mubr.f32.mxu0 0.0
    %v1090 = vand.u32 %v605, 4294901760
    %1091 = vmatmul.mubr.f32.gmra.mrb[0].mxu0 %v1090
    %v1092 = vpop.f32.mrb[0].mxu0
    %v1093 = vadd.f32 %v1015, %v1092
    %v1094 = vpop.f32.mrb[0].mxu0
    %1095 = vdwg.mxu0
    %v1096 = vmul.f32 %v575, 5.656854
    %v1097 = vmul.f32 %v581, 5.656854
    %v1098 = vadd.f32 %v1096, %v1087
    %v1099 = vadd.f32 %v1097, %v1093
    %1100 = vst [vmem:[#allocation5] sm:$0xff] %v1098
    %1101 = vst [vmem:[#allocation5 + $0x8] sm:$0xff] %v1099
    // Predicated region
    $region18: #{tpu_custom_call.1} parent=1 // pred_check
      _
    $region19: #{tpu_custom_call.1} parent=1 // pred_check_branch
      %1103 = sbr.rel (0) target = $region21
    $region20: #{tpu_custom_call.1} parent=1 // pred_region
      %s1105 = ssub.s32 256, 256
      %1106 = vsyncadd [#allocation4], %s1105
      %s1107 = sshll.u32 [#allocation5], 4
      %s1108 = int_to_ptr.vmem [resolvable:$true] %s1107
      %1113 = dma.vmem_to_hbm [thread:$0]  %s1108, 256, %s3, [#allocation4], 128, 128, 8
    $region21: #{tpu_custom_call.1} parent=1 // pred_fallthru
      _
    // Predicated region
    $region22: #{tpu_custom_call.1} parent=1 // pred_check
      _
    $region23: #{tpu_custom_call.1} parent=1 // pred_check_branch
      %1115 = sbr.rel (0) target = $region25
    $region24: #{tpu_custom_call.1} parent=1 // pred_region
      %1116 = dma.done [#allocation4], 256
    $region25: #{tpu_custom_call.1} parent=1 // pred_fallthru
      _
    %1117 = vsyncpa [#allocation3], 1
    %1118 = vsyncpa [#allocation4], 1

</llo_original>
